<compile_context>
chip_gen: v7x
topology: tpu7x:2x2x1
jax: 0.10.0
libtpu: 0.0.40
codegen_flags: <defaults>
</compile_context>

<pallas_src>
import functools

import jax
import jax.numpy as jnp
from jax.experimental import pallas as pl
from jax.experimental.pallas import tpu as pltpu


# ---------------------------------------------------------------------------
# Kernel
# ---------------------------------------------------------------------------
def _spatial_projection_kernel(*refs, conv_mode, tb, in_c, conv_dtype, reduce_dtype):
    """One grid step == TB batch elements.

    Refs (conv_mode in {"kron", "loop"}):
      x_ref   : (TB*C, HW)   features, batch stacked on sublanes (dtype = caller's)
      wc_ref  : (TB*K, TB*C) block-diag kron(I_TB, Wc)   [kron]  OR
                (K, C)       shared 1x1-conv weight      [loop]
      pos_ref : (HW, 3)      columns [pos_x, pos_y, 1]
      wpx_ref : (TB*K, out)  Wp[:, :K].T tiled TB times
      wpy_ref : (TB*K, out)  Wp[:, K:].T tiled TB times
      sel_ref : (TB, TB*K)   kron(I_TB, ones(1, K))  (per-batch segment sum)
      bp_ref  : (1, out)     Linear bias row
      o_ref   : (TB, out)    lane-dense output block
    conv_mode == "none" drops wc_ref (num_kp == in_c -> conv skipped).
    """
    if conv_mode == "none":
        x_ref, pos_ref, wpx_ref, wpy_ref, sel_ref, bp_ref, o_ref = refs
        h = x_ref[...].astype(jnp.float32)                           # (TB*K, HW)
    else:
        x_ref, wc_ref, pos_ref, wpx_ref, wpy_ref, sel_ref, bp_ref, o_ref = refs
        # In-kernel cast (bf16 -> native-rate MXU, half the vreg/VMEM footprint);
        # the wrapper never adds a separate HBM cast pass for x.
        x = x_ref[...].astype(conv_dtype)
        w = wc_ref[...]
        if conv_mode == "kron":
            # Block-diagonal conv: one MXU matmul, zero waste (TB*max(C,K) <= tile).
            h = jnp.dot(w, x, preferred_element_type=jnp.float32)    # (TB*K, HW)
        else:
            # Shared-weight per-batch-element matmuls (used above the MXU tile).
            h = jnp.concatenate(
                [jnp.dot(w, x[b * in_c:(b + 1) * in_c, :],
                         preferred_element_type=jnp.float32) for b in range(tb)],
                axis=0)                                               # (TB*K, HW)

    # Conv bias intentionally omitted: softmax over HW is shift-invariant per row
    # (and the per-row max below is subtracted anyway), so conv_b cancels exactly.
    m = jnp.max(h, axis=-1, keepdims=True)                           # (TB*K, 1)
    e = jnp.exp(h - m)                                               # (TB*K, HW)

    # Unnormalised expectations AND softmax denominator in one MXU matmul.
    red = jnp.dot(e.astype(reduce_dtype), pos_ref[...].astype(reduce_dtype),
                  preferred_element_type=jnp.float32)                # (TB*K, 3)
    inv_s = pl.reciprocal(red[:, 2:3], approx=True)                  # (TB*K, 1)
    kx = red[:, 0:1] * inv_s                                         # keypoint_x
    ky = red[:, 1:2] * inv_s                                         # keypoint_y

    # Linear(2K -> out): per-keypoint contribution, then per-batch segment sum via
    # the block-ones selector matmul -> lane-dense (TB, out) output block.
    g = kx * wpx_ref[...] + ky * wpy_ref[...]                        # (TB*K, out)
    o_ref[...] = (jnp.dot(sel_ref[...], g, preferred_element_type=jnp.float32)
                  + bp_ref[...])


# ---------------------------------------------------------------------------
# Wrapper helpers
# ---------------------------------------------------------------------------
def _pos_buffers(in_h, in_w):
    # Reproduce torch.meshgrid(linspace(-1,1,W), linspace(-1,1,H)) (indexing='ij'):
    # pos_x / pos_y are (W, H) flattened W-major while the feature map is flattened
    # H-major.  This is the (intentional) quirk of the original module; reproduce
    # the buffers exactly rather than "fixing" it.
    lin_w = jnp.linspace(-1.0, 1.0, in_w, dtype=jnp.float32)
    lin_h = jnp.linspace(-1.0, 1.0, in_h, dtype=jnp.float32)
    pos_x, pos_y = jnp.meshgrid(lin_w, lin_h, indexing="ij")         # (W, H) each
    pos_x = pos_x.reshape(1, in_w * in_h)
    pos_y = pos_y.reshape(1, in_w * in_h)
    return jnp.concatenate([pos_x, pos_y], axis=0)                   # (2, H*W)


def _mxu_tile_dim():
    """MXU tile edge: 256 on v6e/v7x, 128 on earlier generations."""
    try:
        kind = jax.devices()[0].device_kind.lower()
    except Exception:
        kind = ""
    for older in ("v2", "v3", "v4", "v5"):
        if older in kind:
            return 128
    return 256


def _vmem_budget_bytes():
    """Per-core VMEM budget with headroom for compiler-internal scratch."""
    cap = 64 << 20                              # conservative default (v7x per-core)
    try:
        cap = int(pltpu.get_tpu_info().vmem_capacity_bytes)
    except Exception:
        pass
    cap = min(max(cap, 32 << 20), 128 << 20)
    return cap - cap // 8                       # ~56 MiB on v7x, ~112 MiB on v5e/v6e


def _pad2_bytes(rows, cols, itemsize):
    """VMEM bytes of a 2-D block, (8, 128)-tile padded."""
    return (-(-rows // 8) * 8) * (-(-cols // 128) * 128) * itemsize


def _vmem_bytes_estimate(tb, in_c, num_kp, hw, out_dim, x_itemsize, conv_itemsize,
                         conv_mode):
    """All TB-dependent VMEM: double-buffered blocks + live in-kernel temporaries."""
    k = num_kp
    total = 2 * _pad2_bytes(tb * in_c, hw, x_itemsize)               # x (dbl-buffered)
    if conv_mode == "kron":
        total += 2 * _pad2_bytes(tb * k, tb * in_c, conv_itemsize)   # kron weight
    elif conv_mode == "loop":
        total += 2 * _pad2_bytes(k, in_c, conv_itemsize)             # shared weight
    total += 2 * _pad2_bytes(hw, 3, 4)                               # [pos_x|pos_y|1]
    total += 2 * 2 * _pad2_bytes(tb * k, out_dim, 4)                 # wpx, wpy
    total += 2 * _pad2_bytes(tb, tb * k, 4)                          # selector
    total += 2 * _pad2_bytes(1, out_dim, 4)                          # proj bias row
    total += 2 * _pad2_bytes(tb, out_dim, 4)                         # output block
    # Live temporaries between the two matmuls: h and e (f32), optional bf16 x, g.
    total += 2 * _pad2_bytes(tb * k, hw, 4)
    if conv_mode != "none" and conv_itemsize < x_itemsize:
        total += _pad2_bytes(tb * in_c, hw, conv_itemsize)
    total += _pad2_bytes(tb * k, out_dim, 4)
    return total


def _pick_batch_tile(batch, allowed):
    """Largest allowed divisor of batch, preferring >= 4 grid steps (>= 2 per v7x
    TensorCore), then >= 2, then anything."""
    divisors = [d for d in range(batch, 0, -1) if batch % d == 0]
    fitting = [d for d in divisors if allowed(d)]
    if not fitting:
        return 1
    for min_steps in (4, 2, 1):
        for d in fitting:                       # descending -> first hit is largest
            if batch // d >= min_steps:
                return d
    return fitting[-1]


def init_spatial_projection(key, input_shape, out_dim):
    """Deterministic synthetic parameters matching the module's shapes."""
    in_c, _, _ = input_shape
    num_kp = out_dim // 2
    k1, k2, k3, k4 = jax.random.split(key, 4)
    return {
        # nn.Conv2d(in_c, num_kp, kernel_size=1): weight (num_kp, in_c, 1, 1) squeezed
        "conv_w": 0.1 * jax.random.normal(k1, (num_kp, in_c), jnp.float32),
        "conv_b": 0.1 * jax.random.normal(k2, (num_kp,), jnp.float32),
        # nn.Linear(2 * num_kp, out_dim)
        "proj_w": 0.1 * jax.random.normal(k3, (out_dim, 2 * num_kp), jnp.float32),
        "proj_b": 0.1 * jax.random.normal(k4, (out_dim,), jnp.float32),
    }


# ---------------------------------------------------------------------------
# Forward
# ---------------------------------------------------------------------------
@functools.partial(jax.jit, static_argnames=("input_shape", "out_dim", "batch_tile",
                                             "conv_in_bf16", "reduce_in_bf16",
                                             "conv_mode"))
def spatial_projection_forward(params, x, *, input_shape, out_dim, batch_tile=None,
                               conv_in_bf16=True, reduce_in_bf16=False,
                               conv_mode=None):
    in_c, in_h, in_w = input_shape
    num_kp = out_dim // 2
    batch = x.shape[0]
    hw = in_h * in_w
    use_conv = num_kp != in_c
    if not use_conv:
        assert conv_mode in (None, "none")

    conv_dtype = jnp.bfloat16 if (use_conv and conv_in_bf16) else jnp.float32
    reduce_dtype = jnp.bfloat16 if reduce_in_bf16 else jnp.float32
    x_itemsize = jnp.dtype(x.dtype).itemsize
    conv_itemsize = jnp.dtype(conv_dtype).itemsize

    mxu = _mxu_tile_dim()
    budget = _vmem_budget_bytes()

    def mode_for(tb):
        if not use_conv:
            return "none"
        if conv_mode is not None:
            return conv_mode
        # Block-diagonal kron only while it still fits one MXU tile (zero waste);
        # above that switch to shared-weight per-element matmuls.
        if tb == 1 or tb * max(in_c, num_kp) <= mxu:
            return "kron"
        return "loop"

    def allowed(tb):
        m = mode_for(tb)
        if m == "loop" and conv_mode is None and tb > 8:
            return False                        # keep the unrolled per-element loop short
        return _vmem_bytes_estimate(tb, in_c, num_kp, hw, out_dim,
                                    x_itemsize, conv_itemsize, m) <= budget

    if batch_tile is not None:
        assert batch % batch_tile == 0, (batch, batch_tile)
        tb = batch_tile
    else:
        tb = _pick_batch_tile(batch, allowed)
    mode = mode_for(tb)
    grid = batch // tb

    # ---- constants laid out for the kernel (tiny, built once under jit) ----
    pos = _pos_buffers(in_h, in_w)                                   # (2, HW)
    pos3 = jnp.concatenate([pos.T, jnp.ones((hw, 1), jnp.float32)], axis=1)  # (HW, 3)

    wp = params["proj_w"]                                            # (out, 2K)
    wpx_rep = jnp.tile(wp[:, :num_kp].T, (tb, 1))                    # (TB*K, out)
    wpy_rep = jnp.tile(wp[:, num_kp:].T, (tb, 1))                    # (TB*K, out)
    bp_row = params["proj_b"].reshape(1, out_dim)
    sel = jnp.kron(jnp.eye(tb, dtype=jnp.float32),
                   jnp.ones((1, num_kp), jnp.float32))               # (TB, TB*K)

    # Pure-metadata reshape; NO dtype cast here (the cast happens in-kernel so the
    # wrapper never spends an extra HBM read+write pass on x).
    x_flat = x.reshape(grid, tb * in_c, hw)

    inputs = [x_flat]
    in_specs = [pl.BlockSpec((None, tb * in_c, hw), lambda i: (i, 0, 0))]
    if mode == "kron":
        wc = jnp.kron(jnp.eye(tb, dtype=jnp.float32),
                      params["conv_w"]).astype(conv_dtype)           # (TB*K, TB*C)
        inputs.append(wc)
        in_specs.append(pl.BlockSpec((tb * num_kp, tb * in_c), lambda i: (0, 0)))
    elif mode == "loop":
        wc = params["conv_w"].astype(conv_dtype)                     # (K, C) shared
        inputs.append(wc)
        in_specs.append(pl.BlockSpec((num_kp, in_c), lambda i: (0, 0)))
    inputs += [pos3, wpx_rep, wpy_rep, sel, bp_row]
    in_specs += [
        pl.BlockSpec((hw, 3), lambda i: (0, 0)),
        pl.BlockSpec((tb * num_kp, out_dim), lambda i: (0, 0)),
        pl.BlockSpec((tb * num_kp, out_dim), lambda i: (0, 0)),
        pl.BlockSpec((tb, tb * num_kp), lambda i: (0, 0)),
        pl.BlockSpec((1, out_dim), lambda i: (0, 0)),
    ]

    est = _vmem_bytes_estimate(tb, in_c, num_kp, hw, out_dim,
                               x_itemsize, conv_itemsize, mode)
    vmem_limit = int(min(max(est + (4 << 20), 8 << 20), budget))

    out3 = pl.pallas_call(
        functools.partial(_spatial_projection_kernel, conv_mode=mode, tb=tb,
                          in_c=in_c, conv_dtype=conv_dtype, reduce_dtype=reduce_dtype),
        out_shape=jax.ShapeDtypeStruct((grid, tb, out_dim), jnp.float32),
        grid=(grid,),
        in_specs=in_specs,
        out_specs=pl.BlockSpec((None, tb, out_dim), lambda i: (i, 0, 0)),
        compiler_params=pltpu.CompilerParams(
            dimension_semantics=("parallel",),
            vmem_limit_bytes=vmem_limit),
    )(*inputs)
    return out3.reshape(batch, out_dim)


# ---------------------------------------------------------------------------
# Pure-JAX reference mirroring the PyTorch forward exactly (for validation)
# ---------------------------------------------------------------------------
def spatial_projection_reference(params, x, *, input_shape, out_dim):
    in_c, in_h, in_w = input_shape
    num_kp = out_dim // 2
    batch = x.shape[0]
    if num_kp != in_c:
        h = jnp.einsum("kc,bchw->bkhw", params["conv_w"], x) \
            + params["conv_b"][None, :, None, None]
    else:
        h = x
    h = h.reshape(-1, in_h * in_w)
    attn = jax.nn.softmax(h, axis=-1)
    pos = _pos_buffers(in_h, in_w)
    kx = jnp.sum(pos[0:1] * attn, axis=1).reshape(batch, num_kp)
    ky = jnp.sum(pos[1:2] * attn, axis=1).reshape(batch, num_kp)
    kp = jnp.concatenate([kx, ky], axis=1)
    return kp @ params["proj_w"].T + params["proj_b"][None, :]


if __name__ == "__main__":
    key = jax.random.PRNGKey(0)
    pkey, xkey = jax.random.split(key)

    # Case 1: num_kp != in_c -> block-diagonal ("kron") conv path, default bf16
    # MXU operands (tolerance widened for the bf16 conv operands).
    B, input_shape, out_dim = 8, (4, 16, 16), 16          # num_kp = 8
    params = init_spatial_projection(pkey, input_shape, out_dim)
    x = jax.random.normal(xkey, (B,) + input_shape, jnp.float32)
    ref = spatial_projection_reference(params, x, input_shape=input_shape,
                                       out_dim=out_dim)

    out = jax.block_until_ready(spatial_projection_forward(
        params, x, input_shape=input_shape, out_dim=out_dim))
    assert out.shape == (B, out_dim), out.shape
    assert jnp.allclose(out, ref, atol=2e-2, rtol=1e-2), float(jnp.max(jnp.abs(out - ref)))

    # Case 1b: same data, full-f32 conv operands -> tight tolerance (the only
    # sub-f32-accurate step is the approximate EUP reciprocal of the denominator).
    out_f32 = jax.block_until_ready(spatial_projection_forward(
        params, x, input_shape=input_shape, out_dim=out_dim, conv_in_bf16=False))
    assert jnp.allclose(out_f32, ref, atol=1e-3, rtol=1e-3), \
        float(jnp.max(jnp.abs(out_f32 - ref)))

    # Case 2: num_kp == in_c -> the conv is statically skipped inside the kernel.
    out_dim2 = 2 * input_shape[0]                          # num_kp = in_c = 4
    params2 = init_spatial_projection(jax.random.fold_in(key, 1), input_shape,
                                      out_dim2)
    ref2 = spatial_projection_reference(params2, x, input_shape=input_shape,
                                        out_dim=out_dim2)
    out2 = jax.block_until_ready(spatial_projection_forward(
        params2, x, input_shape=input_shape, out_dim=out_dim2))
    assert out2.shape == (B, out_dim2), out2.shape
    assert jnp.allclose(out2, ref2, atol=1e-3, rtol=1e-3), \
        float(jnp.max(jnp.abs(out2 - ref2)))

    # Case 3: forced shared-weight "loop" conv path (the mode used when
    # TB*max(C,K) would overflow one MXU tile).
    B3, shape3, out_dim3 = 4, (8, 8, 8), 32               # num_kp = 16 != in_c = 8
    params3 = init_spatial_projection(jax.random.fold_in(key, 2), shape3, out_dim3)
    x3 = jax.random.normal(jax.random.fold_in(key, 3), (B3,) + shape3, jnp.float32)
    ref3 = spatial_projection_reference(params3, x3, input_shape=shape3,
                                        out_dim=out_dim3)
    out3 = jax.block_until_ready(spatial_projection_forward(
        params3, x3, input_shape=shape3, out_dim=out_dim3,
        batch_tile=2, conv_mode="loop"))
    assert out3.shape == (B3, out_dim3), out3.shape
    assert jnp.allclose(out3, ref3, atol=2e-2, rtol=1e-2), \
        float(jnp.max(jnp.abs(out3 - ref3)))

    print("KERNEL_OK")
</pallas_src>

<mosaic_0001>
module attributes {stable_mosaic.version = 11 : i64} {
  func.func @_spatial_projection_kernel(%arg0: i32, %arg1: memref<1x8x256xf32, #tpu.memory_space<vmem>>, %arg2: memref<16x8xbf16, #tpu.memory_space<vmem>>, %arg3: memref<256x3xf32, #tpu.memory_space<vmem>>, %arg4: memref<16x16xf32, #tpu.memory_space<vmem>>, %arg5: memref<16x16xf32, #tpu.memory_space<vmem>>, %arg6: memref<2x16xf32, #tpu.memory_space<vmem>>, %arg7: memref<1x16xf32, #tpu.memory_space<vmem>>, %arg8: memref<1x2x16xf32, #tpu.memory_space<vmem>>) attributes {dimension_semantics = [#tpu.dimension_semantics<parallel>], iteration_bounds = array<i64: 4>, scalar_prefetch = 0 : i64, scratch_operands = 0 : i64, tpu.core_type = #tpu.core_type<tc>, window_params = [{transform_indices = @transform_0, window_bounds = array<i64: 1, 8, 256>}, {pipeline_mode = #tpu.pipeline_mode<synchronous>, transform_indices = @transform_1, window_bounds = array<i64: 16, 8>}, {pipeline_mode = #tpu.pipeline_mode<synchronous>, transform_indices = @transform_2, window_bounds = array<i64: 256, 3>}, {pipeline_mode = #tpu.pipeline_mode<synchronous>, transform_indices = @transform_3, window_bounds = array<i64: 16, 16>}, {pipeline_mode = #tpu.pipeline_mode<synchronous>, transform_indices = @transform_4, window_bounds = array<i64: 16, 16>}, {pipeline_mode = #tpu.pipeline_mode<synchronous>, transform_indices = @transform_5, window_bounds = array<i64: 2, 16>}, {pipeline_mode = #tpu.pipeline_mode<synchronous>, transform_indices = @transform_6, window_bounds = array<i64: 1, 16>}, {transform_indices = @transform_7, window_bounds = array<i64: 1, 2, 16>}]} {
    %c0 = arith.constant 0 : index
    %c0_0 = arith.constant 0 : index
    %c0_1 = arith.constant 0 : index
    %0 = vector.load %arg1[%c0, %c0_0, %c0_1] : memref<1x8x256xf32, #tpu.memory_space<vmem>>, vector<1x8x256xf32>
    %1 = vector.shape_cast %0 : vector<1x8x256xf32> to vector<8x256xf32>
    %2 = arith.truncf %1 : vector<8x256xf32> to vector<8x256xbf16>
    %c0_2 = arith.constant 0 : index
    %c0_3 = arith.constant 0 : index
    %3 = vector.load %arg2[%c0_2, %c0_3] : memref<16x8xbf16, #tpu.memory_space<vmem>>, vector<16x8xbf16>
    %cst = arith.constant dense<0.000000e+00> : vector<16x256xf32>
    %4 = tpu.matmul %3, %2, %cst {dimension_numbers = #tpu.dot_dimension_numbers<[1], [0], [0], [1], [0, 0, 1, 1], [], []>} : vector<16x8xbf16>, vector<8x256xbf16>, vector<16x256xf32> -> vector<16x256xf32>
    %cst_4 = arith.constant dense<0xFF800000> : vector<16xf32>
    %5 = vector.multi_reduction <maximumf>, %4, %cst_4 [1] : vector<16x256xf32> to vector<16xf32>
    %6 = vector.shape_cast %5 : vector<16xf32> to vector<16x1xf32>
    %7 = vector.broadcast %6 : vector<16x1xf32> to vector<16x256xf32>
    %8 = arith.subf %4, %7 : vector<16x256xf32>
    %9 = math.exp %8 : vector<16x256xf32>
    %c0_5 = arith.constant 0 : index
    %c0_6 = arith.constant 0 : index
    %10 = vector.load %arg3[%c0_5, %c0_6] : memref<256x3xf32, #tpu.memory_space<vmem>>, vector<256x3xf32>
    %cst_7 = arith.constant dense<0.000000e+00> : vector<16x3xf32>
    %11 = tpu.matmul %9, %10, %cst_7 {dimension_numbers = #tpu.dot_dimension_numbers<[1], [0], [0], [1], [0, 0, 1, 1], [], []>} : vector<16x256xf32>, vector<256x3xf32>, vector<16x3xf32> -> vector<16x3xf32>
    %12 = vector.extract_strided_slice %11 {offsets = [0, 2], sizes = [16, 1], strides = [1, 1]} : vector<16x3xf32> to vector<16x1xf32>
    %13 = tpu.reciprocal %12 {approx = true} : vector<16x1xf32> -> vector<16x1xf32>
    %14 = vector.extract_strided_slice %11 {offsets = [0, 0], sizes = [16, 1], strides = [1, 1]} : vector<16x3xf32> to vector<16x1xf32>
    %15 = arith.mulf %14, %13 : vector<16x1xf32>
    %16 = vector.extract_strided_slice %11 {offsets = [0, 1], sizes = [16, 1], strides = [1, 1]} : vector<16x3xf32> to vector<16x1xf32>
    %17 = arith.mulf %16, %13 : vector<16x1xf32>
    %c0_8 = arith.constant 0 : index
    %c0_9 = arith.constant 0 : index
    %18 = vector.load %arg4[%c0_8, %c0_9] : memref<16x16xf32, #tpu.memory_space<vmem>>, vector<16x16xf32>
    %19 = vector.broadcast %15 : vector<16x1xf32> to vector<16x16xf32>
    %20 = arith.mulf %19, %18 : vector<16x16xf32>
    %c0_10 = arith.constant 0 : index
    %c0_11 = arith.constant 0 : index
    %21 = vector.load %arg5[%c0_10, %c0_11] : memref<16x16xf32, #tpu.memory_space<vmem>>, vector<16x16xf32>
    %22 = vector.broadcast %17 : vector<16x1xf32> to vector<16x16xf32>
    %23 = arith.mulf %22, %21 : vector<16x16xf32>
    %24 = arith.addf %20, %23 : vector<16x16xf32>
    %c0_12 = arith.constant 0 : index
    %c0_13 = arith.constant 0 : index
    %25 = vector.load %arg6[%c0_12, %c0_13] : memref<2x16xf32, #tpu.memory_space<vmem>>, vector<2x16xf32>
    %cst_14 = arith.constant dense<0.000000e+00> : vector<2x16xf32>
    %26 = tpu.matmul %25, %24, %cst_14 {dimension_numbers = #tpu.dot_dimension_numbers<[1], [0], [0], [1], [0, 0, 1, 1], [], []>} : vector<2x16xf32>, vector<16x16xf32>, vector<2x16xf32> -> vector<2x16xf32>
    %c0_15 = arith.constant 0 : index
    %c0_16 = arith.constant 0 : index
    %27 = vector.load %arg7[%c0_15, %c0_16] : memref<1x16xf32, #tpu.memory_space<vmem>>, vector<1x16xf32>
    %28 = vector.broadcast %27 : vector<1x16xf32> to vector<2x16xf32>
    %29 = arith.addf %26, %28 : vector<2x16xf32>
    %c0_17 = arith.constant 0 : index
    %c0_18 = arith.constant 0 : index
    %c0_19 = arith.constant 0 : index
    %30 = vector.load %arg8[%c0_17, %c0_18, %c0_19] : memref<1x2x16xf32, #tpu.memory_space<vmem>>, vector<1x2x16xf32>
    %31 = vector.shape_cast %30 : vector<1x2x16xf32> to vector<2x16xf32>
    %32 = vector.shape_cast %29 : vector<2x16xf32> to vector<1x2x16xf32>
    tpu.vector_store %arg8[%c0_17, %c0_18, %c0_19], %32 {strides = array<i32>} : memref<1x2x16xf32, #tpu.memory_space<vmem>>, vector<1x2x16xf32>,
    return
  }
  func.func @transform_0(%arg0: i32) -> (i32, i32, i32) {
    %c0_i32 = arith.constant 0 : i32
    %c0_i32_0 = arith.constant 0 : i32
    %c0_i32_1 = arith.constant 0 : i32
    return %arg0, %c0_i32, %c0_i32_0 : i32, i32, i32
  }
  func.func @transform_1(%arg0: i32) -> (i32, i32) {
    %c0_i32 = arith.constant 0 : i32
    %c0_i32_0 = arith.constant 0 : i32
    %c0_i32_1 = arith.constant 0 : i32
    return %c0_i32, %c0_i32_0 : i32, i32
  }
  func.func @transform_2(%arg0: i32) -> (i32, i32) {
    %c0_i32 = arith.constant 0 : i32
    %c0_i32_0 = arith.constant 0 : i32
    %c0_i32_1 = arith.constant 0 : i32
    return %c0_i32, %c0_i32_0 : i32, i32
  }
  func.func @transform_3(%arg0: i32) -> (i32, i32) {
    %c0_i32 = arith.constant 0 : i32
    %c0_i32_0 = arith.constant 0 : i32
    %c0_i32_1 = arith.constant 0 : i32
    return %c0_i32, %c0_i32_0 : i32, i32
  }
  func.func @transform_4(%arg0: i32) -> (i32, i32) {
    %c0_i32 = arith.constant 0 : i32
    %c0_i32_0 = arith.constant 0 : i32
    %c0_i32_1 = arith.constant 0 : i32
    return %c0_i32, %c0_i32_0 : i32, i32
  }
  func.func @transform_5(%arg0: i32) -> (i32, i32) {
    %c0_i32 = arith.constant 0 : i32
    %c0_i32_0 = arith.constant 0 : i32
    %c0_i32_1 = arith.constant 0 : i32
    return %c0_i32, %c0_i32_0 : i32, i32
  }
  func.func @transform_6(%arg0: i32) -> (i32, i32) {
    %c0_i32 = arith.constant 0 : i32
    %c0_i32_0 = arith.constant 0 : i32
    %c0_i32_1 = arith.constant 0 : i32
    return %c0_i32, %c0_i32_0 : i32, i32
  }
  func.func @transform_7(%arg0: i32) -> (i32, i32, i32) {
    %c0_i32 = arith.constant 0 : i32
    %c0_i32_0 = arith.constant 0 : i32
    %c0_i32_1 = arith.constant 0 : i32
    return %arg0, %c0_i32, %c0_i32_0 : i32, i32, i32
  }
}

</mosaic_0001>

<llo_original>
// kernel: spatial_projection_forward.1
$region0: #{spatial_projection_forward.1}
  #allocation0 [shape = 'u32[]', space=smem, size = 0x4, offset = 0x4, fixed_abs, tag = 'smem constant byte address 0x4 - core index']
  #allocation1 [shape = 'u32[144,128]{1,0:T(1,128)}', space=vmem, size = 0x12000, scoped, tag = 'internal scratch']
  %s0 = inlined_call_operand.vmem [shape: f32[4,8,256], index: 0, kind: input, shape index: {}]
  %s1 = inlined_call_operand.vmem [shape: bf16[16,8], index: 1, kind: input, shape index: {}]
  %s2 = inlined_call_operand.vmem [shape: f32[256,3], index: 2, kind: input, shape index: {}]
  %s3 = inlined_call_operand.vmem [shape: f32[16,16], index: 3, kind: input, shape index: {}]
  %s4 = inlined_call_operand.vmem [shape: f32[16,16], index: 4, kind: input, shape index: {}]
  %s5 = inlined_call_operand.vmem [shape: f32[2,16], index: 5, kind: input, shape index: {}]
  %s6 = inlined_call_operand.vmem [shape: f32[1,16], index: 6, kind: input, shape index: {}]
  %s7 = inlined_call_operand.hbm [shape: f32[4,2,16], index: 7, kind: output, shape index: {}]
  %s8 = sld [smem:[#allocation0]]
  $region61: #{spatial_projection_forward.1} parent=0
    _
  %s10 = ssub.s32 1, %s8
  %s11 = scalar_select 0, %s10, %s8
  $region1: #{spatial_projection_forward.1} parent=0
    #allocation2 [shape = 'u8[2048]{0}', space=vmem, size = 0x800, scoped, tag = 'output window, operand 0']
    #allocation3 [shape = 's32[2]{0}', space=sflag, size = 0x8, scoped, tag = 'scoped memory for spatial_projection_forward.1']
    %12 = vsyncpa [#allocation3], 0
    %s13 = scalar_lea.sflag [#allocation3], 1
    %14 = vsyncpa %s13, 0
    loop: start=0, step=1, limit=6
    $region2: #{spatial_projection_forward.1} parent=1 // loop_pre_header
      _
    $region3: #{spatial_projection_forward.1} parent=1 // loop_header
      %s16 = sphi 0, %s20
      %p17 = scmp.ge.s32.totalorder %s16, 6
      %s26 = sphi 0, %s28
      %s29 = sphi 0, %s26
      %s30 = sphi 0, %s29
      %s46 = sphi 0, %s30
      %s50 = sphi 0, %s50
      %s52 = sphi 0, %s50
      %s53 = sphi 0, %s52
      %s67 = sphi 0, %s53
      %s71 = sphi 0, %s71
      %s73 = sphi 0, %s71
      %s74 = sphi 0, %s73
      %s88 = sphi 0, %s74
      %s92 = sphi 0, %s92
      %s94 = sphi 0, %s92
      %s95 = sphi 0, %s94
      %s109 = sphi 0, %s95
      %s113 = sphi 0, %s113
      %s115 = sphi 0, %s113
      %s116 = sphi 0, %s115
      %s130 = sphi 0, %s116
      %s134 = sphi 0, %s134
      %s136 = sphi 0, %s134
      %s137 = sphi 0, %s136
      %s151 = sphi 0, %s137
      %s155 = sphi 0, %s155
      %s157 = sphi 0, %s155
      %s158 = sphi 0, %s157
      %s172 = sphi 0, %s158
      %s178 = sphi 0, %s180
      %s181 = sphi 0, %s178
      %s182 = sphi 0, %s181
      %s198 = sphi 0, %s182
    $region4: #{spatial_projection_forward.1} parent=1 // loop_header_branch
      %19 = sbr.rel (%p17) target = $region8
    $region5: #{spatial_projection_forward.1} parent=1 // loop_body
      %s21 = ssub.s32 %s16, 1
      %s22 = ssub.s32 %s16, 2
      %s23 = sadd.s32 %s16, 1
      %s24 = ssub.s32 %s16, %s23
      %p25 = scmp.eq.s32.totalorder %s24, 0
      %s27 = sadd.s32 %s26, 1
      %s28 = scalar_select %p25, %s26, %s27
      %p31 = pneg %p25
      %p32 = scmp.eq.s32.totalorder %s16, 3
      %p33 = por %p31, %p32
      %p34 = scmp.ne.s32.totalorder %s26, %s29
      %p35 = scmp.eq.s32.totalorder %s16, 0
      %p36 = por %p34, %p35
      %p37 = scmp.ne.s32.totalorder %s26, %s29
      %p38 = scmp.eq.s32.totalorder %s21, 3
      %p39 = por %p37, %p38
      %p40 = scmp.ne.s32.totalorder %s29, %s30
      %p41 = scmp.eq.s32.totalorder %s21, 0
      %p42 = por %p40, %p41
      %p43 = scmp.ne.s32.totalorder %s29, %s30
      %p44 = scmp.eq.s32.totalorder %s22, 3
      %p45 = por %p43, %p44
      %p47 = scmp.ne.s32.totalorder %s30, %s46
      %p48 = scmp.eq.s32.totalorder %s22, 0
      %p49 = por %p47, %p48
      %s51 = sadd.s32 %s50, 1
      %p54 = scmp.eq.s32.totalorder %s16, 3
      %p55 = scmp.ne.s32.totalorder %s50, %s52
      %p56 = scmp.eq.s32.totalorder %s16, 0
      %p57 = por %p55, %p56
      %p58 = scmp.ne.s32.totalorder %s50, %s52
      %p59 = scmp.eq.s32.totalorder %s21, 3
      %p60 = por %p58, %p59
      %p61 = scmp.ne.s32.totalorder %s52, %s53
      %p62 = scmp.eq.s32.totalorder %s21, 0
      %p63 = por %p61, %p62
      %p64 = scmp.ne.s32.totalorder %s52, %s53
      %p65 = scmp.eq.s32.totalorder %s22, 3
      %p66 = por %p64, %p65
      %p68 = scmp.ne.s32.totalorder %s53, %s67
      %p69 = scmp.eq.s32.totalorder %s22, 0
      %p70 = por %p68, %p69
      %s72 = sadd.s32 %s71, 1
      %p75 = scmp.eq.s32.totalorder %s16, 3
      %p76 = scmp.ne.s32.totalorder %s71, %s73
      %p77 = scmp.eq.s32.totalorder %s16, 0
      %p78 = por %p76, %p77
      %p79 = scmp.ne.s32.totalorder %s71, %s73
      %p80 = scmp.eq.s32.totalorder %s21, 3
      %p81 = por %p79, %p80
      %p82 = scmp.ne.s32.totalorder %s73, %s74
      %p83 = scmp.eq.s32.totalorder %s21, 0
      %p84 = por %p82, %p83
      %p85 = scmp.ne.s32.totalorder %s73, %s74
      %p86 = scmp.eq.s32.totalorder %s22, 3
      %p87 = por %p85, %p86
      %p89 = scmp.ne.s32.totalorder %s74, %s88
      %p90 = scmp.eq.s32.totalorder %s22, 0
      %p91 = por %p89, %p90
      %s93 = sadd.s32 %s92, 1
      %p96 = scmp.eq.s32.totalorder %s16, 3
      %p97 = scmp.ne.s32.totalorder %s92, %s94
      %p98 = scmp.eq.s32.totalorder %s16, 0
      %p99 = por %p97, %p98
      %p100 = scmp.ne.s32.totalorder %s92, %s94
      %p101 = scmp.eq.s32.totalorder %s21, 3
      %p102 = por %p100, %p101
      %p103 = scmp.ne.s32.totalorder %s94, %s95
      %p104 = scmp.eq.s32.totalorder %s21, 0
      %p105 = por %p103, %p104
      %p106 = scmp.ne.s32.totalorder %s94, %s95
      %p107 = scmp.eq.s32.totalorder %s22, 3
      %p108 = por %p106, %p107
      %p110 = scmp.ne.s32.totalorder %s95, %s109
      %p111 = scmp.eq.s32.totalorder %s22, 0
      %p112 = por %p110, %p111
      %s114 = sadd.s32 %s113, 1
      %p117 = scmp.eq.s32.totalorder %s16, 3
      %p118 = scmp.ne.s32.totalorder %s113, %s115
      %p119 = scmp.eq.s32.totalorder %s16, 0
      %p120 = por %p118, %p119
      %p121 = scmp.ne.s32.totalorder %s113, %s115
      %p122 = scmp.eq.s32.totalorder %s21, 3
      %p123 = por %p121, %p122
      %p124 = scmp.ne.s32.totalorder %s115, %s116
      %p125 = scmp.eq.s32.totalorder %s21, 0
      %p126 = por %p124, %p125
      %p127 = scmp.ne.s32.totalorder %s115, %s116
      %p128 = scmp.eq.s32.totalorder %s22, 3
      %p129 = por %p127, %p128
      %p131 = scmp.ne.s32.totalorder %s116, %s130
      %p132 = scmp.eq.s32.totalorder %s22, 0
      %p133 = por %p131, %p132
      %s135 = sadd.s32 %s134, 1
      %p138 = scmp.eq.s32.totalorder %s16, 3
      %p139 = scmp.ne.s32.totalorder %s134, %s136
      %p140 = scmp.eq.s32.totalorder %s16, 0
      %p141 = por %p139, %p140
      %p142 = scmp.ne.s32.totalorder %s134, %s136
      %p143 = scmp.eq.s32.totalorder %s21, 3
      %p144 = por %p142, %p143
      %p145 = scmp.ne.s32.totalorder %s136, %s137
      %p146 = scmp.eq.s32.totalorder %s21, 0
      %p147 = por %p145, %p146
      %p148 = scmp.ne.s32.totalorder %s136, %s137
      %p149 = scmp.eq.s32.totalorder %s22, 3
      %p150 = por %p148, %p149
      %p152 = scmp.ne.s32.totalorder %s137, %s151
      %p153 = scmp.eq.s32.totalorder %s22, 0
      %p154 = por %p152, %p153
      %s156 = sadd.s32 %s155, 1
      %p159 = scmp.eq.s32.totalorder %s16, 3
      %p160 = scmp.ne.s32.totalorder %s155, %s157
      %p161 = scmp.eq.s32.totalorder %s16, 0
      %p162 = por %p160, %p161
      %p163 = scmp.ne.s32.totalorder %s155, %s157
      %p164 = scmp.eq.s32.totalorder %s21, 3
      %p165 = por %p163, %p164
      %p166 = scmp.ne.s32.totalorder %s157, %s158
      %p167 = scmp.eq.s32.totalorder %s21, 0
      %p168 = por %p166, %p167
      %p169 = scmp.ne.s32.totalorder %s157, %s158
      %p170 = scmp.eq.s32.totalorder %s22, 3
      %p171 = por %p169, %p170
      %p173 = scmp.ne.s32.totalorder %s158, %s172
      %p174 = scmp.eq.s32.totalorder %s22, 0
      %p175 = por %p173, %p174
      %s176 = ssub.s32 %s16, %s23
      %p177 = scmp.eq.s32.totalorder %s176, 0
      %s179 = sadd.s32 %s178, 1
      %s180 = scalar_select %p177, %s178, %s179
      %p183 = pneg %p177
      %p184 = scmp.eq.s32.totalorder %s16, 3
      %p185 = por %p183, %p184
      %p186 = scmp.ne.s32.totalorder %s178, %s181
      %p187 = scmp.eq.s32.totalorder %s16, 0
      %p188 = por %p186, %p187
      %p189 = scmp.ne.s32.totalorder %s178, %s181
      %p190 = scmp.eq.s32.totalorder %s21, 3
      %p191 = por %p189, %p190
      %p192 = scmp.ne.s32.totalorder %s181, %s182
      %p193 = scmp.eq.s32.totalorder %s21, 0
      %p194 = por %p192, %p193
      %p195 = scmp.ne.s32.totalorder %s181, %s182
      %p196 = scmp.eq.s32.totalorder %s22, 3
      %p197 = por %p195, %p196
      %p199 = scmp.ne.s32.totalorder %s182, %s198
      %p200 = scmp.eq.s32.totalorder %s22, 0
      %p201 = por %p199, %p200
      %p202 = scmp.le.s32.totalorder 1, %s16
      %p203 = scmp.lt.s32.totalorder %s16, 5
      %p204 = pnand %p202, %p203
      %p205 = pneg %p204
      // Predicated region
      $region9: #{spatial_projection_forward.1} parent=5 // pred_check
        _
      $region10: #{spatial_projection_forward.1} parent=5 // pred_check_branch
        %207 = sbr.rel (%p204) target = $region12
      $region11: #{spatial_projection_forward.1} parent=5 // pred_region
        %s208 = ssub.s32 %s16, 1
        // Predicated region
        $region13: #{spatial_projection_forward.1} parent=11 // pred_check
          %p209 = pneg %p63
        $region14: #{spatial_projection_forward.1} parent=11 // pred_check_branch
          %211 = sbr.rel (%p209) target = $region16
        $region15: #{spatial_projection_forward.1} parent=11 // pred_region
          _
        $region16: #{spatial_projection_forward.1} parent=11 // pred_fallthru
          _
        // Predicated region
        $region17: #{spatial_projection_forward.1} parent=11 // pred_check
          %p212 = pneg %p84
        $region18: #{spatial_projection_forward.1} parent=11 // pred_check_branch
          %214 = sbr.rel (%p212) target = $region20
        $region19: #{spatial_projection_forward.1} parent=11 // pred_region
          _
        $region20: #{spatial_projection_forward.1} parent=11 // pred_fallthru
          _
        // Predicated region
        $region21: #{spatial_projection_forward.1} parent=11 // pred_check
          %p215 = pneg %p105
        $region22: #{spatial_projection_forward.1} parent=11 // pred_check_branch
          %217 = sbr.rel (%p215) target = $region24
        $region23: #{spatial_projection_forward.1} parent=11 // pred_region
          _
        $region24: #{spatial_projection_forward.1} parent=11 // pred_fallthru
          _
        // Predicated region
        $region25: #{spatial_projection_forward.1} parent=11 // pred_check
          %p218 = pneg %p126
        $region26: #{spatial_projection_forward.1} parent=11 // pred_check_branch
          %220 = sbr.rel (%p218) target = $region28
        $region27: #{spatial_projection_forward.1} parent=11 // pred_region
          _
        $region28: #{spatial_projection_forward.1} parent=11 // pred_fallthru
          _
        // Predicated region
        $region29: #{spatial_projection_forward.1} parent=11 // pred_check
          %p221 = pneg %p147
        $region30: #{spatial_projection_forward.1} parent=11 // pred_check_branch
          %223 = sbr.rel (%p221) target = $region32
        $region31: #{spatial_projection_forward.1} parent=11 // pred_region
          _
        $region32: #{spatial_projection_forward.1} parent=11 // pred_fallthru
          _
        // Predicated region
        $region33: #{spatial_projection_forward.1} parent=11 // pred_check
          %p224 = pneg %p168
        $region34: #{spatial_projection_forward.1} parent=11 // pred_check_branch
          %226 = sbr.rel (%p224) target = $region36
        $region35: #{spatial_projection_forward.1} parent=11 // pred_region
          _
        $region36: #{spatial_projection_forward.1} parent=11 // pred_fallthru
          _
      $region12: #{spatial_projection_forward.1} parent=5 // pred_fallthru
        _
      %p227 = scmp.lt.s32.totalorder %s16, 4
      // Predicated region
      $region37: #{spatial_projection_forward.1} parent=5 // pred_check
        %p228 = pneg %p227
      $region38: #{spatial_projection_forward.1} parent=5 // pred_check_branch
        %230 = sbr.rel (%p228) target = $region40
      $region39: #{spatial_projection_forward.1} parent=5 // pred_region
        // Predicated region
        $region41: #{spatial_projection_forward.1} parent=39 // pred_check
          %p231 = pneg %p36
        $region42: #{spatial_projection_forward.1} parent=39 // pred_check_branch
          %233 = sbr.rel (%p231) target = $region44
        $region43: #{spatial_projection_forward.1} parent=39 // pred_region
          %p234 = scmp.lt.s32.totalorder %s16, 3
          %s235 = scalar_select %p234, %s16, 3
          %s236 = smul.addr %s235, 2
          %s237 = smul.addr %s236, 8
          %s238 = scalar_lea.vmem %s0, %s237
        $region44: #{spatial_projection_forward.1} parent=39 // pred_fallthru
          _
      $region40: #{spatial_projection_forward.1} parent=5 // pred_fallthru
        _
      %p239 = scmp.le.s32.totalorder 1, %s16
      %p240 = scmp.lt.s32.totalorder %s16, 5
      %p241 = pnand %p239, %p240
      %p242 = pneg %p241
      // Predicated region
      $region45: #{spatial_projection_forward.1} parent=5 // pred_check
        _
      $region46: #{spatial_projection_forward.1} parent=5 // pred_check_branch
        %244 = sbr.rel (%p241) target = $region48
      $region47: #{spatial_projection_forward.1} parent=5 // pred_region
        %s245 = ssub.s32 %s16, 1
        %p246 = scmp.lt.s32.totalorder %s21, 3
        %s247 = scalar_select %p246, %s21, 3
        %s248 = smul.addr %s247, 2
        %s249 = smul.addr %s248, 8
        %s250 = scalar_lea.vmem %s0, %s249
        %p251 = pneg %p42
        %p252 = pneg %p39
        %p253 = pneg %p63
        %p254 = pneg %p60
        %p255 = pneg %p84
        %p256 = pneg %p81
        %p257 = pneg %p105
        %p258 = pneg %p102
        %p259 = pneg %p126
        %p260 = pneg %p123
        %p261 = pneg %p147
        %p262 = pneg %p144
        %p263 = pneg %p168
        %p264 = pneg %p165
        %p265 = pneg %p194
        %p266 = pneg %p191
        %s267 = sand.u32 %s181, 1
        %s268 = scalar_lea.sflag [#allocation3], %s267
        %s269 = sand.u32 %s181, 1
        %s270 = smul.addr %s269, 2
        %s271 = scalar_lea.vmem [#allocation2], %s270
        %p272 = scmp.lt.s32.totalorder %s21, 3
        %s273 = scalar_select %p272, %s21, 3
        %s274 = smul.addr %s273, 2
        %s275 = smul.addr %s274, 8
        %s276 = scalar_lea.vmem %s0, %s275
        %v278 = vld [vmem:[%s276] sm:$0xff]
        %v279 = vld [vmem:[%s276 + $0x8] sm:$0xff]
        %v280 = vpack.c.bf16 %v278, %v278
        %v281 = vpack.c.bf16 %v279, %v279
        %v282 = vld [vmem:[%s1] sm:$0xf]
        %v283 = vld [vmem:[%s1 + $0x4] sm:$0xf]
        %v286 = vunpack.c.l.b16 %v282
        %v287 = vunpack.c.l.b16 %v283
        %v288 = vpack.c.b16 %v287, %v286
        %vm289 = vcmask 64512
        %v291 = vsel %vm289, %v288, 0
        %vm293 = vcmask 1043456
        %v295 = vsel %vm293, %v280, 0
        %v298 = vsel %vm293, %v281, 0
        %300 = vmatprep.subr.bf16.mxu0 %v298
        %301 = vmatpush1.bf16.msra.mxu0 %v295
        %302 = vmatprep.subr.bf16.mxu0 0
        %303 = vmatpush1.bf16.msra.mxu0 0
        %304 = vmatprep.subr.bf16.mxu0 0
        %305 = vmatpush1.bf16.msra.mxu0 0
        %306 = vmatprep.subr.bf16.mxu0 0
        %307 = vmatpush1.bf16.msra.mxu0 0
        %308 = vmatprep.subr.bf16.mxu0 0
        %309 = vmatpush1.bf16.msra.mxu0 0
        %310 = vmatprep.subr.bf16.mxu0 0
        %311 = vmatpush1.bf16.msra.mxu0 0
        %312 = vmatprep.subr.bf16.mxu0 0
        %313 = vmatpush1.bf16.msra.mxu0 0
        %314 = vmatprep.subr.bf16.mxu0 0
        %315 = vmatpush1.bf16.msra.mxu0 0
        %316 = vmatprep.subr.bf16.mxu0 0
        %317 = vmatpush1.bf16.msra.mxu0 0
        %318 = vmatprep.subr.bf16.mxu0 0
        %319 = vmatpush1.bf16.msra.mxu0 0
        %320 = vmatprep.subr.bf16.mxu0 0
        %321 = vmatpush1.bf16.msra.mxu0 0
        %322 = vmatprep.subr.bf16.mxu0 0
        %323 = vmatpush1.bf16.msra.mxu0 0
        %324 = vmatprep.subr.bf16.mxu0 0
        %325 = vmatpush1.bf16.msra.mxu0 0
        %326 = vmatprep.subr.bf16.mxu0 0
        %327 = vmatpush1.bf16.msra.mxu0 0
        %328 = vmatprep.subr.bf16.mxu0 0
        %329 = vmatpush1.bf16.msra.mxu0 0
        %330 = vmatprep.subr.bf16.mxu0 0
        %331 = vmatpush1.bf16.msra.mxu0 0
        %332 = vmatprep.mubr.bf16.mxu0 0
        %333 = vmatmul.mubr.bf16.gmra.mrb[0].mxu0 %v291
        %v334 = vpop.f32.mrb[0].mxu0
        %v335 = vadd.f32 0.0, %v334
        %v336 = vpop.f32.mrb[0].mxu0
        %v337 = vadd.f32 0.0, %v336
        %v338 = vpop.f32.mrb[0].mxu0
        %v339 = vadd.f32 0.0, %v338
        %v340 = vpop.f32.mrb[0].mxu0
        %v341 = vadd.f32 0.0, %v340
        %342 = vdwg.mxu0
        %v343 = vmax.f32 %v335, %v337
        %344 = vmax.xlane.f32.xlu0 %v343
        %v345 = vpop.xlane.xlu0 %344
        %v346 = vmax.f32 %v339, %v341
        %347 = vmax.xlane.f32.xlu0 %v346
        %v348 = vpop.xlane.xlu0 %347
        %v349 = vsub.f32 %v335, %v345
        %v350 = vsub.f32 %v337, %v345
        %v351 = vsub.f32 %v339, %v348
        %v352 = vsub.f32 %v341, %v348
        %v353 = vmul.f32 %v349, 1.442695
        %v354 = vpow.pop %v353
        %v355 = vmul.f32 %v350, 1.442695
        %v356 = vpow.pop %v355
        %v357 = vmul.f32 %v351, 1.442695
        %v358 = vpow.pop %v357
        %v359 = vmul.f32 %v352, 1.442695
        %v360 = vpow.pop %v359
        %v361 = vld [vmem:[%s2] sm:$0xff]
        %v362 = vld [vmem:[%s2 + $0x8] sm:$0xff]
        %v363 = vld [vmem:[%s2 + $0x10] sm:$0xff]
        %v364 = vld [vmem:[%s2 + $0x18] sm:$0xff]
        %v365 = vld [vmem:[%s2 + $0x20] sm:$0xff]
        %v366 = vld [vmem:[%s2 + $0x28] sm:$0xff]
        %v367 = vld [vmem:[%s2 + $0x30] sm:$0xff]
        %v368 = vld [vmem:[%s2 + $0x38] sm:$0xff]
        %v369 = vld [vmem:[%s2 + $0x40] sm:$0xff]
        %v370 = vld [vmem:[%s2 + $0x48] sm:$0xff]
        %v371 = vld [vmem:[%s2 + $0x50] sm:$0xff]
        %v372 = vld [vmem:[%s2 + $0x58] sm:$0xff]
        %v373 = vld [vmem:[%s2 + $0x60] sm:$0xff]
        %v374 = vld [vmem:[%s2 + $0x68] sm:$0xff]
        %v375 = vld [vmem:[%s2 + $0x70] sm:$0xff]
        %v376 = vld [vmem:[%s2 + $0x78] sm:$0xff]
        %v377 = vld [vmem:[%s2 + $0x80] sm:$0xff]
        %v378 = vld [vmem:[%s2 + $0x88] sm:$0xff]
        %v379 = vld [vmem:[%s2 + $0x90] sm:$0xff]
        %v380 = vld [vmem:[%s2 + $0x98] sm:$0xff]
        %v381 = vld [vmem:[%s2 + $0xa0] sm:$0xff]
        %v382 = vld [vmem:[%s2 + $0xa8] sm:$0xff]
        %v383 = vld [vmem:[%s2 + $0xb0] sm:$0xff]
        %v384 = vld [vmem:[%s2 + $0xb8] sm:$0xff]
        %v385 = vld [vmem:[%s2 + $0xc0] sm:$0xff]
        %v386 = vld [vmem:[%s2 + $0xc8] sm:$0xff]
        %v387 = vld [vmem:[%s2 + $0xd0] sm:$0xff]
        %v388 = vld [vmem:[%s2 + $0xd8] sm:$0xff]
        %v389 = vld [vmem:[%s2 + $0xe0] sm:$0xff]
        %v390 = vld [vmem:[%s2 + $0xe8] sm:$0xff]
        %v391 = vld [vmem:[%s2 + $0xf0] sm:$0xff]
        %v392 = vld [vmem:[%s2 + $0xf8] sm:$0xff]
        %393 = vmatprep.subr.mxu0 0.0
        %394 = vmatpush1.msra.mxu0 %v361
        %395 = vmatprep.subr.mxu0 0.0
        %396 = vmatpush1.msra.mxu0 %v362
        %397 = vmatprep.subr.mxu0 0.0
        %398 = vmatpush1.msra.mxu0 %v363
        %399 = vmatprep.subr.mxu0 0.0
        %400 = vmatpush1.msra.mxu0 %v364
        %401 = vmatprep.subr.mxu0 0.0
        %402 = vmatpush1.msra.mxu0 %v365
        %403 = vmatprep.subr.mxu0 0.0
        %404 = vmatpush1.msra.mxu0 %v366
        %405 = vmatprep.subr.mxu0 0.0
        %406 = vmatpush1.msra.mxu0 %v367
        %407 = vmatprep.subr.mxu0 0.0
        %408 = vmatpush1.msra.mxu0 %v368
        %409 = vmatprep.subr.mxu0 0.0
        %410 = vmatpush1.msra.mxu0 %v369
        %411 = vmatprep.subr.mxu0 0.0
        %412 = vmatpush1.msra.mxu0 %v370
        %413 = vmatprep.subr.mxu0 0.0
        %414 = vmatpush1.msra.mxu0 %v371
        %415 = vmatprep.subr.mxu0 0.0
        %416 = vmatpush1.msra.mxu0 %v372
        %417 = vmatprep.subr.mxu0 0.0
        %418 = vmatpush1.msra.mxu0 %v373
        %419 = vmatprep.subr.mxu0 0.0
        %420 = vmatpush1.msra.mxu0 %v374
        %421 = vmatprep.subr.mxu0 0.0
        %422 = vmatpush1.msra.mxu0 %v375
        %423 = vmatprep.subr.mxu0 0.0
        %424 = vmatpush1.msra.mxu0 %v376
        %425 = vmatprep.subr.mxu0 0.0
        %426 = vmatpush1.msra.mxu0 %v377
        %427 = vmatprep.subr.mxu0 0.0
        %428 = vmatpush1.msra.mxu0 %v378
        %429 = vmatprep.subr.mxu0 0.0
        %430 = vmatpush1.msra.mxu0 %v379
        %431 = vmatprep.subr.mxu0 0.0
        %432 = vmatpush1.msra.mxu0 %v380
        %433 = vmatprep.subr.mxu0 0.0
        %434 = vmatpush1.msra.mxu0 %v381
        %435 = vmatprep.subr.mxu0 0.0
        %436 = vmatpush1.msra.mxu0 %v382
        %437 = vmatprep.subr.mxu0 0.0
        %438 = vmatpush1.msra.mxu0 %v383
        %439 = vmatprep.subr.mxu0 0.0
        %440 = vmatpush1.msra.mxu0 %v384
        %441 = vmatprep.subr.mxu0 0.0
        %442 = vmatpush1.msra.mxu0 %v385
        %443 = vmatprep.subr.mxu0 0.0
        %444 = vmatpush1.msra.mxu0 %v386
        %445 = vmatprep.subr.mxu0 0.0
        %446 = vmatpush1.msra.mxu0 %v387
        %447 = vmatprep.subr.mxu0 0.0
        %448 = vmatpush1.msra.mxu0 %v388
        %449 = vmatprep.subr.mxu0 0.0
        %450 = vmatpush1.msra.mxu0 %v389
        %451 = vmatprep.subr.mxu0 0.0
        %452 = vmatpush1.msra.mxu0 %v390
        %453 = vmatprep.subr.mxu0 0.0
        %454 = vmatpush1.msra.mxu0 %v391
        %455 = vmatprep.subr.mxu0 0.0
        %456 = vmatpush1.msra.mxu0 %v392
        %457 = vmatprep.mubr.f32.mxu0 %v356
        %458 = vmatmul.mubr.f32.gmra.mrb[0].mxu0 %v354
        %v459 = vpop.f32.mrb[0].mxu0
        %v460 = vadd.f32 0.0, %v459
        %v461 = vpop.f32.mrb[0].mxu0
        %462 = vmatprep.mubr.f32.mxu0 %v360
        %463 = vmatmul.mubr.f32.gmra.mrb[0].mxu0 %v358
        %v464 = vpop.f32.mrb[0].mxu0
        %v465 = vadd.f32 0.0, %v464
        %v466 = vpop.f32.mrb[0].mxu0
        %467 = vdwg.mxu0
        %v468 = vrcp.pop %v460
        %v469 = vrcp.pop %v465
        %472 = vrot.lane.b32.xlu0 %v468, 126
        %v473 = vpop.permute.xlu0 %472
        %474 = vrot.lane.b32.xlu0 %v469, 126
        %v475 = vpop.permute.xlu0 %474
        %v478 = vmul.f32 %v460, %v473
        %v479 = vmul.f32 %v465, %v475
        %480 = vrot.lane.b32.xlu0 %v468, 127
        %v481 = vpop.permute.xlu0 %480
        %482 = vrot.lane.b32.xlu0 %v469, 127
        %v483 = vpop.permute.xlu0 %482
        %v486 = vmul.f32 %v460, %v481
        %v487 = vmul.f32 %v465, %v483
        %v488 = vld [vmem:[%s3] sm:$0xff]
        %v489 = vld [vmem:[%s3 + $0x8] sm:$0xff]
        %491 = vset.pattern.permute.xlu0 0
        %492 = vperm.xlu0 %491, %v478
        %v493 = vpop.permute.xlu0 %492
        %496 = vset.pattern.permute.xlu0 0
        %497 = vperm.xlu0 %496, %v479
        %v498 = vpop.permute.xlu0 %497
        %v500 = vmul.f32 %v493, %v488
        %v501 = vmul.f32 %v498, %v489
        %v502 = vld [vmem:[%s4] sm:$0xff]
        %v503 = vld [vmem:[%s4 + $0x8] sm:$0xff]
        %505 = vset.pattern.permute.xlu0 1
        %506 = vperm.xlu0 %505, %v486
        %v507 = vpop.permute.xlu0 %506
        %510 = vset.pattern.permute.xlu0 1
        %511 = vperm.xlu0 %510, %v487
        %v512 = vpop.permute.xlu0 %511
        %v514 = vmul.f32 %v507, %v502
        %v515 = vmul.f32 %v512, %v503
        %v516 = vadd.f32 %v500, %v514
        %v517 = vadd.f32 %v501, %v515
        %v518 = vld [vmem:[%s5] sm:$0x3]
        %v519 = vld [vmem:[%s6] sm:$0x1]
        %v521 = vlaneseq
        %v522 = vshrl.u32 %v521, 7
        %v523 = vsub.s32 0, %v522
        %v524 = vrot.slane %v519, %v523
        %vm526 = vcmask 130048
        %v528 = vsel %vm526, %v518, 0
        %530 = vmatprep.subr.mxu0 0.0
        %531 = vmatpush1.msra.mxu0 %v516
        %532 = vmatprep.subr.mxu0 0.0
        %533 = vmatpush1.msra.mxu0 %v517
        %534 = vmatprep.subr.mxu0 0.0
        %535 = vmatpush1.msra.mxu0 0.0
        %536 = vmatprep.subr.mxu0 0.0
        %537 = vmatpush1.msra.mxu0 0.0
        %538 = vmatprep.subr.mxu0 0.0
        %539 = vmatpush1.msra.mxu0 0.0
        %540 = vmatprep.subr.mxu0 0.0
        %541 = vmatpush1.msra.mxu0 0.0
        %542 = vmatprep.subr.mxu0 0.0
        %543 = vmatpush1.msra.mxu0 0.0
        %544 = vmatprep.subr.mxu0 0.0
        %545 = vmatpush1.msra.mxu0 0.0
        %546 = vmatprep.subr.mxu0 0.0
        %547 = vmatpush1.msra.mxu0 0.0
        %548 = vmatprep.subr.mxu0 0.0
        %549 = vmatpush1.msra.mxu0 0.0
        %550 = vmatprep.subr.mxu0 0.0
        %551 = vmatpush1.msra.mxu0 0.0
        %552 = vmatprep.subr.mxu0 0.0
        %553 = vmatpush1.msra.mxu0 0.0
        %554 = vmatprep.subr.mxu0 0.0
        %555 = vmatpush1.msra.mxu0 0.0
        %556 = vmatprep.subr.mxu0 0.0
        %557 = vmatpush1.msra.mxu0 0.0
        %558 = vmatprep.subr.mxu0 0.0
        %559 = vmatpush1.msra.mxu0 0.0
        %560 = vmatprep.subr.mxu0 0.0
        %561 = vmatpush1.msra.mxu0 0.0
        %562 = vmatprep.subr.mxu0 0.0
        %563 = vmatpush1.msra.mxu0 0.0
        %564 = vmatprep.subr.mxu0 0.0
        %565 = vmatpush1.msra.mxu0 0.0
        %566 = vmatprep.subr.mxu0 0.0
        %567 = vmatpush1.msra.mxu0 0.0
        %568 = vmatprep.subr.mxu0 0.0
        %569 = vmatpush1.msra.mxu0 0.0
        %570 = vmatprep.subr.mxu0 0.0
        %571 = vmatpush1.msra.mxu0 0.0
        %572 = vmatprep.subr.mxu0 0.0
        %573 = vmatpush1.msra.mxu0 0.0
        %574 = vmatprep.subr.mxu0 0.0
        %575 = vmatpush1.msra.mxu0 0.0
        %576 = vmatprep.subr.mxu0 0.0
        %577 = vmatpush1.msra.mxu0 0.0
        %578 = vmatprep.subr.mxu0 0.0
        %579 = vmatpush1.msra.mxu0 0.0
        %580 = vmatprep.subr.mxu0 0.0
        %581 = vmatpush1.msra.mxu0 0.0
        %582 = vmatprep.subr.mxu0 0.0
        %583 = vmatpush1.msra.mxu0 0.0
        %584 = vmatprep.subr.mxu0 0.0
        %585 = vmatpush1.msra.mxu0 0.0
        %586 = vmatprep.subr.mxu0 0.0
        %587 = vmatpush1.msra.mxu0 0.0
        %588 = vmatprep.subr.mxu0 0.0
        %589 = vmatpush1.msra.mxu0 0.0
        %590 = vmatprep.subr.mxu0 0.0
        %591 = vmatpush1.msra.mxu0 0.0
        %592 = vmatprep.subr.mxu0 0.0
        %593 = vmatpush1.msra.mxu0 0.0
        %594 = vmatprep.mubr.f32.mxu0 0.0
        %595 = vmatmul.mubr.f32.gmra.mrb[0].mxu0 %v528
        %v596 = vpop.f32.mrb[0].mxu0
        %v597 = vadd.f32 %v524, %v596
        %v598 = vpop.f32.mrb[0].mxu0
        %599 = vdwg.mxu0
        %vm600 = vcmask 123904
        %601 = vst.msk [vmem:[%s271] sm:$0x3] %vm600, %v597
        %s602 = sand.u32 %s181, 1
        %s603 = scalar_lea.sflag [#allocation3], %s602
        %s604 = sand.u32 %s181, 1
        %s605 = smul.addr %s604, 2
        %s606 = scalar_lea.vmem [#allocation2], %s605
        // Predicated region
        $region49: #{spatial_projection_forward.1} parent=47 // pred_check
          %p607 = pneg %p191
        $region50: #{spatial_projection_forward.1} parent=47 // pred_check_branch
          %609 = sbr.rel (%p607) target = $region52
        $region51: #{spatial_projection_forward.1} parent=47 // pred_region
          %s611 = ssub.s32 32, 32
          %612 = vsyncadd %s603, %s611
          %s613 = smul.addr %s21, 32
          %s614 = scalar_lea.hbm %s7, %s613
          %s616 = sshll.u32 %s606, 4
          %s617 = int_to_ptr.vmem [resolvable:$true] %s616
          %619 = dma.vmem_to_hbm [thread:$0]  %s617, 32, %s614, %s603
        $region52: #{spatial_projection_forward.1} parent=47 // pred_fallthru
          _
      $region48: #{spatial_projection_forward.1} parent=5 // pred_fallthru
        _
      %p620 = scmp.le.s32.totalorder 2, %s16
      // Predicated region
      $region53: #{spatial_projection_forward.1} parent=5 // pred_check
        %p621 = pneg %p620
      $region54: #{spatial_projection_forward.1} parent=5 // pred_check_branch
        %623 = sbr.rel (%p621) target = $region56
      $region55: #{spatial_projection_forward.1} parent=5 // pred_region
        %s624 = ssub.s32 %s16, 2
        // Predicated region
        $region57: #{spatial_projection_forward.1} parent=55 // pred_check
          %p625 = pneg %p197
        $region58: #{spatial_projection_forward.1} parent=55 // pred_check_branch
          %627 = sbr.rel (%p625) target = $region60
        $region59: #{spatial_projection_forward.1} parent=55 // pred_region
          %s628 = sand.u32 %s182, 1
          %s629 = scalar_lea.sflag [#allocation3], %s628
          %s630 = sand.u32 %s182, 1
          %s631 = smul.addr %s630, 2
          %s632 = scalar_lea.vmem [#allocation2], %s631
          %633 = dma.done %s629, 32
        $region60: #{spatial_projection_forward.1} parent=55 // pred_fallthru
          _
      $region56: #{spatial_projection_forward.1} parent=5 // pred_fallthru
        _
    $region6: #{spatial_projection_forward.1} parent=1 // loop_footer
      %s20 = sadd.s32 1, %s16
    $region7: #{spatial_projection_forward.1} parent=1 // loop_footer_branch
      %15 = sbr.rel target = $region3
    $region8: #{spatial_projection_forward.1} parent=1 // loop_exit
      _
    %634 = vsyncpa [#allocation3], 1
    %s635 = scalar_lea.sflag [#allocation3], 1
    %636 = vsyncpa %s635, 1

</llo_original>
